<compile_context>
chip_gen: v5e
topology: v5e:2x2
jax: 0.10.0
libtpu: 0.0.40
codegen_flags: <defaults>
</compile_context>

<pallas_src>
import jax
import jax.numpy as jnp
from jax.experimental import pallas as pl
from jax.experimental.pallas import tpu as pltpu

# ----------------------------- configuration -----------------------------
B = 2           # batch
L = 16          # sequence length (sublane axis, multiple of 8)
C_IN = 7        # input channels (enc_in)
D_MARK = 6      # time-feature dim for freq='h'  (freq_map['h'] = 6)
D_MODEL = 128   # d_model (lane-dense output)
K_PACK = 3 * C_IN + D_MARK + 1   # 28 = [W_prev | W_center | W_next | W_mark | bias]


# ------------------------------ fused kernel ------------------------------
def embedding_kernel(x_ref, xmark_ref, w_ref, out_ref):
    # x_ref:    (B, L, C_IN)     xmark_ref: (B, L, D_MARK)
    # w_ref:    (K_PACK, D_MODEL) packed [W0; W1; W2; Wmark; bias]
    # out_ref:  (B, L, D_MODEL)
    w = w_ref[...]
    ones_col = jnp.ones((L, 1), dtype=jnp.float32)   # folds the Linear bias into the GEMM

    # Build the packed LHS (B*L, K_PACK).  B is tiny and static -> unrolled loop;
    # the circular conv taps are sublane rolls (XLU) on each per-batch (L, C_IN) tile.
    # NOTE: L must be kept whole inside the block, otherwise the roll no longer
    # implements the circular boundary (would need +/-1 row halos).
    lhs_parts = []
    for b in range(B):
        xb = x_ref[b]                                 # (L, C_IN)
        xmb = xmark_ref[b]                            # (L, D_MARK)
        xb_prev = pltpu.roll(xb, 1, axis=0)           # row t <- x[(t-1) % L]
        xb_next = pltpu.roll(xb, L - 1, axis=0)       # row t <- x[(t+1) % L]
        lhs_parts.append(
            jnp.concatenate([xb_prev, xb, xb_next, xmb, ones_col], axis=-1))
    lhs = jnp.concatenate(lhs_parts, axis=0)          # (B*L, K_PACK)

    # Single fused GEMM: conv taps + temporal linear + bias in one MXU push/pop.
    out = jnp.dot(lhs, w, preferred_element_type=jnp.float32)   # (B*L, D_MODEL)

    # dropout(p=0.1) is identity in eval mode.
    # TODO(synk): training-mode dropout would need pltpu.prng_seed / prng_random_bits here.
    out_ref[...] = out.reshape(B, L, D_MODEL).astype(out_ref.dtype)


# -------------------------------- wrapper ----------------------------------
def pack_weights(wtok, wmark, bmark):
    """Pack all parameters into one (K_PACK, D_MODEL) matrix (done once at init).

    Expected layouts:
      wtok : (3, C_IN, D_MODEL)  == PyTorch Conv1d weight (d_model, c_in, 3).permute(2, 1, 0)
             tap 0 multiplies x[(t-1)%L], tap 1 -> x[t], tap 2 -> x[(t+1)%L]
             (matches Conv1d(kernel_size=3, padding=1, padding_mode='circular')).
      wmark: (D_MARK, D_MODEL)   == PyTorch Linear weight (d_model, d_inp).T
      bmark: (1, D_MODEL)        == PyTorch Linear bias
    """
    assert wtok.shape == (3, C_IN, D_MODEL), wtok.shape
    assert wmark.shape == (D_MARK, D_MODEL), wmark.shape
    assert bmark.shape == (1, D_MODEL), bmark.shape
    return jnp.concatenate([wtok[0], wtok[1], wtok[2], wmark, bmark], axis=0)


def data_embedding_wo_pos(x, x_mark, w_packed):
    """x: (B, L, C_IN), x_mark: (B, L, D_MARK), w_packed: (K_PACK, D_MODEL) -> (B, L, D_MODEL)."""
    # Single grid step: the whole problem fits comfortably in VMEM.  At real
    # Autoformer sizes (L=96..384, B>=32) tile along B only (full L per block),
    # mark that axis "parallel" (v7x 2-TC sharding) and size TILE_B so each block
    # is ~0.5-4 MiB to amortize per-step overhead.
    return pl.pallas_call(
        embedding_kernel,
        out_shape=jax.ShapeDtypeStruct((B, L, D_MODEL), jnp.float32),
        grid=(1,),
        in_specs=[
            pl.BlockSpec((B, L, C_IN), lambda i: (0, 0, 0)),
            pl.BlockSpec((B, L, D_MARK), lambda i: (0, 0, 0)),
            pl.BlockSpec((K_PACK, D_MODEL), lambda i: (0, 0)),
        ],
        out_specs=pl.BlockSpec((B, L, D_MODEL), lambda i: (0, 0, 0)),
        compiler_params=pltpu.CompilerParams(dimension_semantics=("arbitrary",)),
    )(x, x_mark, w_packed)


# ---------------------------------- main -----------------------------------
if __name__ == "__main__":
    key = jax.random.PRNGKey(0)
    kx, km, k1, k2, k3 = jax.random.split(key, 5)

    x = jax.random.normal(kx, (B, L, C_IN), dtype=jnp.float32)
    x_mark = jax.random.normal(km, (B, L, D_MARK), dtype=jnp.float32)

    # TokenEmbedding Conv1d weight, tap-major (3, c_in, d_model) == weight.permute(2, 1, 0).
    # TODO(synk): PyTorch's Kaiming-normal init of tokenConv is not replicated (scaled normal).
    wtok = 0.1 * jax.random.normal(k1, (3, C_IN, D_MODEL), dtype=jnp.float32)
    # TimeFeatureEmbedding Linear: PyTorch weight (d_model, d_inp) -> (d_inp, d_model) here.
    wmark = 0.1 * jax.random.normal(k2, (D_MARK, D_MODEL), dtype=jnp.float32)
    bmark = 0.1 * jax.random.normal(k3, (1, D_MODEL), dtype=jnp.float32)

    w_packed = pack_weights(wtok, wmark, bmark)       # done once at init

    out = data_embedding_wo_pos(x, x_mark, w_packed)
    out = jax.block_until_ready(out)

    # pure-JAX reference (same math): circular k=3 conv + linear + bias
    x_prev = jnp.roll(x, 1, axis=1)
    x_next = jnp.roll(x, -1, axis=1)
    tok_ref = (jnp.einsum("blc,cd->bld", x_prev, wtok[0])
               + jnp.einsum("blc,cd->bld", x, wtok[1])
               + jnp.einsum("blc,cd->bld", x_next, wtok[2]))
    ref = tok_ref + jnp.einsum("blm,md->bld", x_mark, wmark) + bmark[None]

    assert out.shape == (B, L, D_MODEL)
    assert bool(jnp.all(jnp.isfinite(out)))
    max_err = float(jnp.max(jnp.abs(out - ref)))
    assert max_err < 1e-4, f"mismatch vs reference: max abs err {max_err}"
    print("KERNEL_OK")
</pallas_src>

<mosaic_0001>
module attributes {stable_mosaic.version = 11 : i64} {
  func.func @embedding_kernel(%arg0: i32, %arg1: memref<2x16x7xf32, #tpu.memory_space<vmem>>, %arg2: memref<2x16x6xf32, #tpu.memory_space<vmem>>, %arg3: memref<28x128xf32, #tpu.memory_space<vmem>>, %arg4: memref<2x16x128xf32, #tpu.memory_space<vmem>>) attributes {dimension_semantics = [#tpu.dimension_semantics<arbitrary>], iteration_bounds = array<i64: 1>, scalar_prefetch = 0 : i64, scratch_operands = 0 : i64, tpu.core_type = #tpu.core_type<tc>, window_params = [{pipeline_mode = #tpu.pipeline_mode<synchronous>, transform_indices = @transform_0, window_bounds = array<i64: 2, 16, 7>}, {pipeline_mode = #tpu.pipeline_mode<synchronous>, transform_indices = @transform_1, window_bounds = array<i64: 2, 16, 6>}, {pipeline_mode = #tpu.pipeline_mode<synchronous>, transform_indices = @transform_2, window_bounds = array<i64: 28, 128>}, {pipeline_mode = #tpu.pipeline_mode<synchronous>, transform_indices = @transform_3, window_bounds = array<i64: 2, 16, 128>}]} {
    %c0 = arith.constant 0 : index
    %c0_0 = arith.constant 0 : index
    %0 = vector.load %arg3[%c0, %c0_0] : memref<28x128xf32, #tpu.memory_space<vmem>>, vector<28x128xf32>
    %cst = arith.constant 1.000000e+00 : f32
    %1 = vector.broadcast %cst : f32 to vector<16x1xf32>
    %c0_1 = arith.constant 0 : index
    %c0_2 = arith.constant 0 : index
    %c0_3 = arith.constant 0 : index
    %2 = vector.load %arg1[%c0_1, %c0_2, %c0_3] : memref<2x16x7xf32, #tpu.memory_space<vmem>>, vector<1x16x7xf32>
    %3 = vector.shape_cast %2 : vector<1x16x7xf32> to vector<16x7xf32>
    %c0_4 = arith.constant 0 : index
    %c0_5 = arith.constant 0 : index
    %c0_6 = arith.constant 0 : index
    %4 = vector.load %arg2[%c0_4, %c0_5, %c0_6] : memref<2x16x6xf32, #tpu.memory_space<vmem>>, vector<1x16x6xf32>
    %5 = vector.shape_cast %4 : vector<1x16x6xf32> to vector<16x6xf32>
    %c1_i32 = arith.constant 1 : i32
    %6 = tpu.dynamic_rotate %3 by %c1_i32 dim 0 : vector<16x7xf32>, i32 -> vector<16x7xf32>
    %c15_i32 = arith.constant 15 : i32
    %7 = tpu.dynamic_rotate %3 by %c15_i32 dim 0 : vector<16x7xf32>, i32 -> vector<16x7xf32>
    %8 = tpu.concatenate %6, %3, %7, %5, %1 in 1 : vector<16x7xf32>, vector<16x7xf32>, vector<16x7xf32>, vector<16x6xf32>, vector<16x1xf32> -> vector<16x28xf32>
    %c1 = arith.constant 1 : index
    %c0_7 = arith.constant 0 : index
    %c0_8 = arith.constant 0 : index
    %9 = vector.load %arg1[%c1, %c0_7, %c0_8] : memref<2x16x7xf32, #tpu.memory_space<vmem>>, vector<1x16x7xf32>
    %10 = vector.shape_cast %9 : vector<1x16x7xf32> to vector<16x7xf32>
    %c1_9 = arith.constant 1 : index
    %c0_10 = arith.constant 0 : index
    %c0_11 = arith.constant 0 : index
    %11 = vector.load %arg2[%c1_9, %c0_10, %c0_11] : memref<2x16x6xf32, #tpu.memory_space<vmem>>, vector<1x16x6xf32>
    %12 = vector.shape_cast %11 : vector<1x16x6xf32> to vector<16x6xf32>
    %c1_i32_12 = arith.constant 1 : i32
    %13 = tpu.dynamic_rotate %10 by %c1_i32_12 dim 0 : vector<16x7xf32>, i32 -> vector<16x7xf32>
    %c15_i32_13 = arith.constant 15 : i32
    %14 = tpu.dynamic_rotate %10 by %c15_i32_13 dim 0 : vector<16x7xf32>, i32 -> vector<16x7xf32>
    %15 = tpu.concatenate %13, %10, %14, %12, %1 in 1 : vector<16x7xf32>, vector<16x7xf32>, vector<16x7xf32>, vector<16x6xf32>, vector<16x1xf32> -> vector<16x28xf32>
    %16 = tpu.concatenate %8, %15 in 0 : vector<16x28xf32>, vector<16x28xf32> -> vector<32x28xf32>
    %cst_14 = arith.constant dense<0.000000e+00> : vector<32x128xf32>
    %17 = tpu.matmul %16, %0, %cst_14 {dimension_numbers = #tpu.dot_dimension_numbers<[1], [0], [0], [1], [0, 0, 1, 1], [], []>} : vector<32x28xf32>, vector<28x128xf32>, vector<32x128xf32> -> vector<32x128xf32>
    %18 = vector.shape_cast %17 : vector<32x128xf32> to vector<2x16x128xf32>
    %c0_15 = arith.constant 0 : index
    %c0_16 = arith.constant 0 : index
    %c0_17 = arith.constant 0 : index
    %19 = vector.load %arg4[%c0_15, %c0_16, %c0_17] : memref<2x16x128xf32, #tpu.memory_space<vmem>>, vector<2x16x128xf32>
    tpu.vector_store %arg4[%c0_15, %c0_16, %c0_17], %18 {strides = array<i32>} : memref<2x16x128xf32, #tpu.memory_space<vmem>>, vector<2x16x128xf32>,
    return
  }
  func.func @transform_0(%arg0: i32) -> (i32, i32, i32) {
    %c0_i32 = arith.constant 0 : i32
    %c0_i32_0 = arith.constant 0 : i32
    %c0_i32_1 = arith.constant 0 : i32
    %c0_i32_2 = arith.constant 0 : i32
    return %c0_i32, %c0_i32_0, %c0_i32_1 : i32, i32, i32
  }
  func.func @transform_1(%arg0: i32) -> (i32, i32, i32) {
    %c0_i32 = arith.constant 0 : i32
    %c0_i32_0 = arith.constant 0 : i32
    %c0_i32_1 = arith.constant 0 : i32
    %c0_i32_2 = arith.constant 0 : i32
    return %c0_i32, %c0_i32_0, %c0_i32_1 : i32, i32, i32
  }
  func.func @transform_2(%arg0: i32) -> (i32, i32) {
    %c0_i32 = arith.constant 0 : i32
    %c0_i32_0 = arith.constant 0 : i32
    %c0_i32_1 = arith.constant 0 : i32
    return %c0_i32, %c0_i32_0 : i32, i32
  }
  func.func @transform_3(%arg0: i32) -> (i32, i32, i32) {
    %c0_i32 = arith.constant 0 : i32
    %c0_i32_0 = arith.constant 0 : i32
    %c0_i32_1 = arith.constant 0 : i32
    %c0_i32_2 = arith.constant 0 : i32
    return %c0_i32, %c0_i32_0, %c0_i32_1 : i32, i32, i32
  }
}

</mosaic_0001>

<llo_original>
// kernel: tpu_custom_call.1
$region0: #{tpu_custom_call.1}
  #allocation0 [shape = 'u32[]', space=smem, size = 0x4, offset = 0x4, fixed_abs, tag = 'smem constant byte address 0x4 - core index']
  #allocation1 [shape = 'u32[72,128]{1,0:T(1,128)}', space=vmem, size = 0x9000, scoped, tag = 'internal scratch']
  %s0 = inlined_call_operand.vmem [shape: f32[2,16,7], index: 0, kind: input, shape index: {}]
  %s1 = inlined_call_operand.vmem [shape: f32[2,16,6], index: 1, kind: input, shape index: {}]
  %s2 = inlined_call_operand.vmem [shape: f32[28,128], index: 2, kind: input, shape index: {}]
  %s3 = inlined_call_operand.hbm [shape: f32[2,16,128], index: 3, kind: output, shape index: {}]
  %s4 = sld [smem:[#allocation0]]
  $region22: #{tpu_custom_call.1} parent=0
    _
  %s6 = ssub.s32 1, %s4
  %s7 = scalar_select 0, %s6, %s4
  $region1: #{tpu_custom_call.1} parent=0
    #allocation2 [shape = 'u8[16384]{0}', space=vmem, size = 0x4000, scoped, tag = 'output window, operand 0, single buffered']
    #allocation3 [shape = 's32[1]{0}', space=sflag, size = 0x4, scoped, tag = 'scoped memory for tpu_custom_call.1']
    %8 = vsyncpa [#allocation3], 0
    // Predicated region
    $region2: #{tpu_custom_call.1} parent=1 // pred_check
      _
    $region3: #{tpu_custom_call.1} parent=1 // pred_check_branch
      %10 = sbr.rel (0) target = $region5
    $region4: #{tpu_custom_call.1} parent=1 // pred_region
      _
    $region5: #{tpu_custom_call.1} parent=1 // pred_fallthru
      _
    // Predicated region
    $region6: #{tpu_custom_call.1} parent=1 // pred_check
      _
    $region7: #{tpu_custom_call.1} parent=1 // pred_check_branch
      %12 = sbr.rel (0) target = $region9
    $region8: #{tpu_custom_call.1} parent=1 // pred_region
      _
    $region9: #{tpu_custom_call.1} parent=1 // pred_fallthru
      _
    // Predicated region
    $region10: #{tpu_custom_call.1} parent=1 // pred_check
      _
    $region11: #{tpu_custom_call.1} parent=1 // pred_check_branch
      %14 = sbr.rel (0) target = $region13
    $region12: #{tpu_custom_call.1} parent=1 // pred_region
      _
    $region13: #{tpu_custom_call.1} parent=1 // pred_fallthru
      _
    %v15 = vld [vmem:[%s2] sm:$0xff]
    %v16 = vld [vmem:[%s2 + $0x8] sm:$0xff]
    %v17 = vld [vmem:[%s2 + $0x10] sm:$0xff]
    %v18 = vld [vmem:[%s2 + $0x18] sm:$0xf]
    %v19 = vld [vmem:[%s0] sm:$0xff]
    %v20 = vld [vmem:[%s0 + $0x8] sm:$0xff]
    %v21 = vld [vmem:[%s1] sm:$0xff]
    %v22 = vld [vmem:[%s1 + $0x8] sm:$0xff]
    %v23 = vrot.slane %v19, 7
    %v24 = vrot.slane %v20, 7
    %v25 = vlaneseq
    %v26 = vshrl.u32 %v25, 7
    %vm27 = vcmp.lt.s32.totalorder %v26, 1
    %v28 = vsel %vm27, %v23, %v24
    %v29 = vsel %vm27, %v24, %v23
    %v30 = vrot.slane %v19, 1
    %v31 = vrot.slane %v20, 1
    %vm32 = vcmp.lt.s32.totalorder %v26, 7
    %v33 = vsel %vm32, %v30, %v31
    %v34 = vsel %vm32, %v31, %v30
    %37 = vrot.lane.b32.xlu0 %v19, 7
    %v38 = vpop.permute.xlu0 %37
    %39 = vrot.lane.b32.xlu0 %v20, 7
    %v40 = vpop.permute.xlu0 %39
    %45 = vrot.lane.b32.xlu0 %v33, 14
    %v46 = vpop.permute.xlu0 %45
    %47 = vrot.lane.b32.xlu0 %v34, 14
    %v48 = vpop.permute.xlu0 %47
    %53 = vrot.lane.b32.xlu0 %v21, 21
    %v54 = vpop.permute.xlu0 %53
    %55 = vrot.lane.b32.xlu0 %v22, 21
    %v56 = vpop.permute.xlu0 %55
    %vm59 = vcmask 56320
    %v60 = vsel %vm59, %v29, %v38
    %v61 = vsel %vm59, %v28, %v40
    %vm62 = vcmask 113664
    %v63 = vsel %vm62, %v60, %v46
    %v64 = vsel %vm62, %v61, %v48
    %vm65 = vcmask 171008
    %v66 = vsel %vm65, %v63, %v54
    %v67 = vsel %vm65, %v64, %v56
    %vm68 = vcmask 220160
    %v69 = vsel %vm68, %v66, 1.0
    %v70 = vsel %vm68, %v67, 1.0
    %s71 = scalar_lea.vmem %s0, 16
    %v72 = vld [vmem:[%s71] sm:$0xff]
    %v73 = vld [vmem:[%s71 + $0x8] sm:$0xff]
    %s74 = scalar_lea.vmem %s1, 16
    %v75 = vld [vmem:[%s74] sm:$0xff]
    %v76 = vld [vmem:[%s74 + $0x8] sm:$0xff]
    %v77 = vrot.slane %v72, 7
    %v78 = vrot.slane %v73, 7
    %v79 = vsel %vm27, %v77, %v78
    %v80 = vsel %vm27, %v78, %v77
    %v81 = vrot.slane %v72, 1
    %v82 = vrot.slane %v73, 1
    %v83 = vsel %vm32, %v81, %v82
    %v84 = vsel %vm32, %v82, %v81
    %87 = vrot.lane.b32.xlu0 %v72, 7
    %v88 = vpop.permute.xlu0 %87
    %89 = vrot.lane.b32.xlu0 %v73, 7
    %v90 = vpop.permute.xlu0 %89
    %95 = vrot.lane.b32.xlu0 %v83, 14
    %v96 = vpop.permute.xlu0 %95
    %97 = vrot.lane.b32.xlu0 %v84, 14
    %v98 = vpop.permute.xlu0 %97
    %103 = vrot.lane.b32.xlu0 %v75, 21
    %v104 = vpop.permute.xlu0 %103
    %105 = vrot.lane.b32.xlu0 %v76, 21
    %v106 = vpop.permute.xlu0 %105
    %v109 = vsel %vm59, %v80, %v88
    %v110 = vsel %vm59, %v79, %v90
    %v111 = vsel %vm62, %v109, %v96
    %v112 = vsel %vm62, %v110, %v98
    %v113 = vsel %vm65, %v111, %v104
    %v114 = vsel %vm65, %v112, %v106
    %v115 = vsel %vm68, %v113, 1.0
    %v116 = vsel %vm68, %v114, 1.0
    %vm117 = vcmask 228352
    %v119 = vsel %vm117, %v69, 0
    %v122 = vsel %vm117, %v70, 0
    %v125 = vsel %vm117, %v115, 0
    %v128 = vsel %vm117, %v116, 0
    %vm130 = vcmask 1043456
    %v132 = vsel %vm130, %v18, 0
    %134 = vmatpush.msra.mxu0 0.0
    %135 = vmatpush.msra.mxu0 0.0
    %136 = vmatpush.msra.mxu0 0.0
    %137 = vmatpush.msra.mxu0 0.0
    %138 = vmatpush.msra.mxu0 0.0
    %139 = vmatpush.msra.mxu0 0.0
    %140 = vmatpush.msra.mxu0 0.0
    %141 = vmatpush.msra.mxu0 0.0
    %142 = vmatpush.msra.mxu0 0.0
    %143 = vmatpush.msra.mxu0 0.0
    %144 = vmatpush.msra.mxu0 0.0
    %145 = vmatpush.msra.mxu0 0.0
    %146 = vmatpush.msra.mxu0 %v132
    %147 = vmatpush.msra.mxu0 %v17
    %148 = vmatpush.msra.mxu0 %v16
    %149 = vmatpush.msra.mxu0 %v15
    %150 = vmatmul.f32.gmra.mxu0 %v119
    %v151 = vpop.f32.mrf.mxu0
    %v152 = vadd.f32 0.0, %v151
    %153 = vmatmul.f32.gmra.mxu0 %v122
    %v154 = vpop.f32.mrf.mxu0
    %v155 = vadd.f32 0.0, %v154
    %156 = vmatmul.f32.gmra.mxu0 %v125
    %v157 = vpop.f32.mrf.mxu0
    %v158 = vadd.f32 0.0, %v157
    %159 = vmatmul.f32.gmra.mxu0 %v128
    %v160 = vpop.f32.mrf.mxu0
    %v161 = vadd.f32 0.0, %v160
    %162 = vdwg.mxu0
    %163 = vst [vmem:[#allocation2] sm:$0xff] %v152
    %164 = vst [vmem:[#allocation2 + $0x8] sm:$0xff] %v155
    %165 = vst [vmem:[#allocation2 + $0x10] sm:$0xff] %v158
    %166 = vst [vmem:[#allocation2 + $0x18] sm:$0xff] %v161
    // Predicated region
    $region14: #{tpu_custom_call.1} parent=1 // pred_check
      _
    $region15: #{tpu_custom_call.1} parent=1 // pred_check_branch
      %168 = sbr.rel (0) target = $region17
    $region16: #{tpu_custom_call.1} parent=1 // pred_region
      %170 = vsyncadd [#allocation3], 0
      %s171 = sshll.u32 [#allocation2], 4
      %s172 = int_to_ptr.vmem [resolvable:$true] %s171
      %s173 = sshll.u32 %s3, 4
      %s174 = int_to_ptr.hbm [resolvable:$true] %s173
      %179 = dma.vmem_to_hbm [thread:$0]  %s172, 512, %s174, [#allocation3], 128, 128, 8
    $region17: #{tpu_custom_call.1} parent=1 // pred_fallthru
      _
    // Predicated region
    $region18: #{tpu_custom_call.1} parent=1 // pred_check
      _
    $region19: #{tpu_custom_call.1} parent=1 // pred_check_branch
      %181 = sbr.rel (0) target = $region21
    $region20: #{tpu_custom_call.1} parent=1 // pred_region
      %183 = dma.done [#allocation3], 512
    $region21: #{tpu_custom_call.1} parent=1 // pred_fallthru
      _
    %184 = vsyncpa [#allocation3], 1

</llo_original>
